<compile_context>
chip_gen: v5e
topology: v5e:2x2
jax: 0.10.0
libtpu: 0.0.40
codegen_flags: <defaults>
</compile_context>

<pallas_src>
import functools

import jax
import jax.numpy as jnp
from jax.experimental import pallas as pl
from jax.experimental.pallas import tpu as pltpu


def _round_up(n, m):
    return ((n + m - 1) // m) * m


def _gru_gate_kernel(x_ref, y_ref, w_ref, u_ref, g_ref, b_ref, o_ref, *, d_model):
    D = d_model
    x = x_ref[...]                                   # (tm, D) compute dtype (bf16)
    y = y_ref[...]                                   # (tm, D)

    # Two fused MXU matmuls with f32 accumulation:
    #   yw = y @ [Wz | Wr | Wg]   -> (tm, 3D)
    #   xu = x @ [Uz | Ur]        -> (tm, 2D)
    yw = jnp.dot(y, w_ref[...], preferred_element_type=jnp.float32)
    xu = jnp.dot(x, u_ref[...], preferred_element_type=jnp.float32)

    x32 = x.astype(jnp.float32)

    # r = sigmoid(W_r y + U_r x);  h_hat = tanh(W_g y + U_g (r * x))
    r = jax.nn.sigmoid(yw[:, D:2 * D] + xu[:, D:2 * D])
    rx = (r * x32).astype(g_ref.dtype)
    h_hat = jnp.tanh(
        yw[:, 2 * D:]
        + jnp.dot(rx, g_ref[...], preferred_element_type=jnp.float32))

    # z = sigmoid(W_z y + b_z + U_z x)
    z = jax.nn.sigmoid(yw[:, :D] + xu[:, :D] + b_ref[...])

    # (1 - z) * x + z * h_hat  ==  x + z * (h_hat - x)   (fewer live f32 temps)
    o_ref[...] = (x32 + z * (h_hat - x32)).astype(o_ref.dtype)


def gru_gate(x, y, params, *, tm=256, compute_dtype=jnp.bfloat16):
    """GTrXL GRU gate. x, y: [B, S, D]; params hold transposed weights + b_z.

    Output dtype matches x.dtype; MXU operands are cast to `compute_dtype`.
    """
    B, S, D = x.shape
    M = B * S

    # Pack weights so the kernel runs 3 wide matmuls instead of 6 narrow ones.
    w_all = jnp.concatenate(
        [params["wz_t"], params["wr_t"], params["wg_t"]], axis=1
    ).astype(compute_dtype)                                   # (D, 3D)
    u_zr = jnp.concatenate(
        [params["uz_t"], params["ur_t"]], axis=1
    ).astype(compute_dtype)                                   # (D, 2D)
    ug = params["ug_t"].astype(compute_dtype)                 # (D, D)
    bz = params["bz"].astype(jnp.float32)                     # (1, D) added to f32 acc

    # Large token tile (multiple of 8), but keep >= 2 grid steps so both
    # TensorCores get work on v7x megacore.  The last block may be ragged:
    # Pallas discards OOB writes and each row is independent, so it is safe.
    tm_eff = max(8, min(tm, _round_up(pl.cdiv(M, 2), 8)))
    grid_m = pl.cdiv(M, tm_eff)

    x2 = x.reshape(M, D).astype(compute_dtype)
    y2 = y.reshape(M, D).astype(compute_dtype)

    tok_spec = pl.BlockSpec((tm_eff, D), lambda i: (i, 0))
    w_spec = pl.BlockSpec((D, 3 * D), lambda i: (0, 0))
    u_spec = pl.BlockSpec((D, 2 * D), lambda i: (0, 0))
    g_spec = pl.BlockSpec((D, D), lambda i: (0, 0))
    b_spec = pl.BlockSpec((1, D), lambda i: (0, 0))

    out2 = pl.pallas_call(
        functools.partial(_gru_gate_kernel, d_model=D),
        out_shape=jax.ShapeDtypeStruct((M, D), x.dtype),
        grid_spec=pltpu.PrefetchScalarGridSpec(
            num_scalar_prefetch=0,
            grid=(grid_m,),
            in_specs=[tok_spec, tok_spec, w_spec, u_spec, g_spec, b_spec],
            out_specs=pl.BlockSpec((tm_eff, D), lambda i: (i, 0)),
        ),
        compiler_params=pltpu.CompilerParams(
            dimension_semantics=("parallel",),
            vmem_limit_bytes=48 * 1024 * 1024,
        ),
    )(x2, y2, w_all, u_zr, ug, bz)

    return out2.reshape(B, S, D)


def init_params(key, d_model, dtype=jnp.float32):
    """Deterministic synthetic init mirroring GRUGate.__init__ shapes."""
    ks = jax.random.split(key, 6)
    scale = 1.0 / jnp.sqrt(d_model)

    def lin(k):
        # torch Linear weight has shape (out, in); store transposed (in, out).
        w = jax.random.uniform(k, (d_model, d_model), dtype, -scale, scale)
        return w.T

    return {
        "wr_t": lin(ks[0]),
        "ur_t": lin(ks[1]),
        "wz_t": lin(ks[2]),
        "uz_t": lin(ks[3]),
        "wg_t": lin(ks[4]),
        "ug_t": lin(ks[5]),
        # linear_w_z.bias initialized to -2 (init_bias)
        "bz": jnp.full((1, d_model), -2.0, dtype),
    }


def gru_gate_ref(x, y, p, compute_dtype=jnp.float32):
    """Pure-JAX reference.  `compute_dtype` mimics the kernel's MXU-operand
    quantization so the comparison isolates real bugs from bf16 rounding."""
    f32 = jnp.float32
    q = lambda a: a.astype(compute_dtype).astype(f32)
    xq, yq = q(x), q(y)
    bz = p["bz"].astype(f32)
    z = jax.nn.sigmoid(yq @ q(p["wz_t"]) + bz + xq @ q(p["uz_t"]))
    r = jax.nn.sigmoid(yq @ q(p["wr_t"]) + xq @ q(p["ur_t"]))
    h_hat = jnp.tanh(yq @ q(p["wg_t"]) + q(r * xq) @ q(p["ug_t"]))
    return ((1.0 - z) * xq + z * h_hat).astype(x.dtype)


if __name__ == "__main__":
    D = 128
    key = jax.random.PRNGKey(0)
    kx, ky, kp = jax.random.split(key, 3)
    params = init_params(kp, D)

    # Case 1: small slab, tiling divides evenly (B=2, S=8 -> M=16).
    x = jax.random.normal(kx, (2, 8, D), jnp.float32)
    y = jax.random.normal(ky, (2, 8, D), jnp.float32)
    out = jax.block_until_ready(gru_gate(x, y, params))
    ref = gru_gate_ref(x, y, params, compute_dtype=jnp.bfloat16)
    assert out.shape == x.shape
    assert jnp.allclose(out, ref, atol=2e-2, rtol=2e-2), \
        float(jnp.max(jnp.abs(out - ref)))

    # Case 2: token count not divisible by the tile -> exercises the ragged
    # last-block path (no pad copy, OOB writes masked by Pallas).
    x2 = jax.random.normal(kx, (3, 40, D), jnp.float32)
    y2 = jax.random.normal(ky, (3, 40, D), jnp.float32)
    out2 = jax.block_until_ready(gru_gate(x2, y2, params))
    ref2 = gru_gate_ref(x2, y2, params, compute_dtype=jnp.bfloat16)
    assert out2.shape == x2.shape
    assert jnp.allclose(out2, ref2, atol=2e-2, rtol=2e-2), \
        float(jnp.max(jnp.abs(out2 - ref2)))

    print("KERNEL_OK")
</pallas_src>

<mosaic_0001>
module attributes {stable_mosaic.version = 11 : i64} {
  func.func @_gru_gate_kernel(%arg0: i32, %arg1: memref<8x128xbf16, #tpu.memory_space<vmem>>, %arg2: memref<8x128xbf16, #tpu.memory_space<vmem>>, %arg3: memref<128x384xbf16, #tpu.memory_space<vmem>>, %arg4: memref<128x256xbf16, #tpu.memory_space<vmem>>, %arg5: memref<128x128xbf16, #tpu.memory_space<vmem>>, %arg6: memref<1x128xf32, #tpu.memory_space<vmem>>, %arg7: memref<8x128xf32, #tpu.memory_space<vmem>>) attributes {dimension_semantics = [#tpu.dimension_semantics<parallel>], iteration_bounds = array<i64: 2>, scalar_prefetch = 0 : i64, scratch_operands = 0 : i64, tpu.core_type = #tpu.core_type<tc>, window_params = [{transform_indices = @transform_0, window_bounds = array<i64: 8, 128>}, {transform_indices = @transform_1, window_bounds = array<i64: 8, 128>}, {pipeline_mode = #tpu.pipeline_mode<synchronous>, transform_indices = @transform_2, window_bounds = array<i64: 128, 384>}, {pipeline_mode = #tpu.pipeline_mode<synchronous>, transform_indices = @transform_3, window_bounds = array<i64: 128, 256>}, {pipeline_mode = #tpu.pipeline_mode<synchronous>, transform_indices = @transform_4, window_bounds = array<i64: 128, 128>}, {pipeline_mode = #tpu.pipeline_mode<synchronous>, transform_indices = @transform_5, window_bounds = array<i64: 1, 128>}, {transform_indices = @transform_6, window_bounds = array<i64: 8, 128>}]} {
    %c0 = arith.constant 0 : index
    %c0_0 = arith.constant 0 : index
    %0 = vector.load %arg1[%c0, %c0_0] : memref<8x128xbf16, #tpu.memory_space<vmem>>, vector<8x128xbf16>
    %c0_1 = arith.constant 0 : index
    %c0_2 = arith.constant 0 : index
    %1 = vector.load %arg2[%c0_1, %c0_2] : memref<8x128xbf16, #tpu.memory_space<vmem>>, vector<8x128xbf16>
    %c0_3 = arith.constant 0 : index
    %c0_4 = arith.constant 0 : index
    %2 = vector.load %arg3[%c0_3, %c0_4] : memref<128x384xbf16, #tpu.memory_space<vmem>>, vector<128x384xbf16>
    %cst = arith.constant dense<0.000000e+00> : vector<8x384xf32>
    %3 = tpu.matmul %1, %2, %cst {dimension_numbers = #tpu.dot_dimension_numbers<[1], [0], [0], [1], [0, 0, 1, 1], [], []>} : vector<8x128xbf16>, vector<128x384xbf16>, vector<8x384xf32> -> vector<8x384xf32>
    %c0_5 = arith.constant 0 : index
    %c0_6 = arith.constant 0 : index
    %4 = vector.load %arg4[%c0_5, %c0_6] : memref<128x256xbf16, #tpu.memory_space<vmem>>, vector<128x256xbf16>
    %cst_7 = arith.constant dense<0.000000e+00> : vector<8x256xf32>
    %5 = tpu.matmul %0, %4, %cst_7 {dimension_numbers = #tpu.dot_dimension_numbers<[1], [0], [0], [1], [0, 0, 1, 1], [], []>} : vector<8x128xbf16>, vector<128x256xbf16>, vector<8x256xf32> -> vector<8x256xf32>
    %6 = arith.extf %0 : vector<8x128xbf16> to vector<8x128xf32>
    %7 = vector.extract_strided_slice %3 {offsets = [0, 128], sizes = [8, 128], strides = [1, 1]} : vector<8x384xf32> to vector<8x128xf32>
    %8 = vector.extract_strided_slice %5 {offsets = [0, 128], sizes = [8, 128], strides = [1, 1]} : vector<8x256xf32> to vector<8x128xf32>
    %9 = arith.addf %7, %8 : vector<8x128xf32>
    %10 = arith.negf %9 : vector<8x128xf32>
    %11 = math.exp %10 : vector<8x128xf32>
    %cst_8 = arith.constant 1.000000e+00 : f32
    %12 = vector.broadcast %cst_8 : f32 to vector<8x128xf32>
    %13 = arith.addf %12, %11 : vector<8x128xf32>
    %14 = arith.divf %12, %13 : vector<8x128xf32>
    %15 = arith.mulf %14, %6 : vector<8x128xf32>
    %16 = arith.truncf %15 : vector<8x128xf32> to vector<8x128xbf16>
    %17 = vector.extract_strided_slice %3 {offsets = [0, 256], sizes = [8, 128], strides = [1, 1]} : vector<8x384xf32> to vector<8x128xf32>
    %c0_9 = arith.constant 0 : index
    %c0_10 = arith.constant 0 : index
    %18 = vector.load %arg5[%c0_9, %c0_10] : memref<128x128xbf16, #tpu.memory_space<vmem>>, vector<128x128xbf16>
    %cst_11 = arith.constant dense<0.000000e+00> : vector<8x128xf32>
    %19 = tpu.matmul %16, %18, %cst_11 {dimension_numbers = #tpu.dot_dimension_numbers<[1], [0], [0], [1], [0, 0, 1, 1], [], []>} : vector<8x128xbf16>, vector<128x128xbf16>, vector<8x128xf32> -> vector<8x128xf32>
    %20 = arith.addf %17, %19 : vector<8x128xf32>
    %21 = math.tanh %20 : vector<8x128xf32>
    %22 = vector.extract_strided_slice %3 {offsets = [0, 0], sizes = [8, 128], strides = [1, 1]} : vector<8x384xf32> to vector<8x128xf32>
    %23 = vector.extract_strided_slice %5 {offsets = [0, 0], sizes = [8, 128], strides = [1, 1]} : vector<8x256xf32> to vector<8x128xf32>
    %24 = arith.addf %22, %23 : vector<8x128xf32>
    %c0_12 = arith.constant 0 : index
    %c0_13 = arith.constant 0 : index
    %25 = vector.load %arg6[%c0_12, %c0_13] : memref<1x128xf32, #tpu.memory_space<vmem>>, vector<1x128xf32>
    %26 = vector.broadcast %25 : vector<1x128xf32> to vector<8x128xf32>
    %27 = arith.addf %24, %26 : vector<8x128xf32>
    %28 = arith.negf %27 : vector<8x128xf32>
    %29 = math.exp %28 : vector<8x128xf32>
    %cst_14 = arith.constant 1.000000e+00 : f32
    %30 = vector.broadcast %cst_14 : f32 to vector<8x128xf32>
    %31 = arith.addf %30, %29 : vector<8x128xf32>
    %32 = arith.divf %30, %31 : vector<8x128xf32>
    %33 = arith.subf %21, %6 : vector<8x128xf32>
    %34 = arith.mulf %32, %33 : vector<8x128xf32>
    %35 = arith.addf %6, %34 : vector<8x128xf32>
    %c0_15 = arith.constant 0 : index
    %c0_16 = arith.constant 0 : index
    %36 = vector.load %arg7[%c0_15, %c0_16] : memref<8x128xf32, #tpu.memory_space<vmem>>, vector<8x128xf32>
    tpu.vector_store %arg7[%c0_15, %c0_16], %35 {strides = array<i32>} : memref<8x128xf32, #tpu.memory_space<vmem>>, vector<8x128xf32>,
    return
  }
  func.func @transform_0(%arg0: i32) -> (i32, i32) {
    %c0_i32 = arith.constant 0 : i32
    %c0_i32_0 = arith.constant 0 : i32
    return %arg0, %c0_i32 : i32, i32
  }
  func.func @transform_1(%arg0: i32) -> (i32, i32) {
    %c0_i32 = arith.constant 0 : i32
    %c0_i32_0 = arith.constant 0 : i32
    return %arg0, %c0_i32 : i32, i32
  }
  func.func @transform_2(%arg0: i32) -> (i32, i32) {
    %c0_i32 = arith.constant 0 : i32
    %c0_i32_0 = arith.constant 0 : i32
    %c0_i32_1 = arith.constant 0 : i32
    return %c0_i32, %c0_i32_0 : i32, i32
  }
  func.func @transform_3(%arg0: i32) -> (i32, i32) {
    %c0_i32 = arith.constant 0 : i32
    %c0_i32_0 = arith.constant 0 : i32
    %c0_i32_1 = arith.constant 0 : i32
    return %c0_i32, %c0_i32_0 : i32, i32
  }
  func.func @transform_4(%arg0: i32) -> (i32, i32) {
    %c0_i32 = arith.constant 0 : i32
    %c0_i32_0 = arith.constant 0 : i32
    %c0_i32_1 = arith.constant 0 : i32
    return %c0_i32, %c0_i32_0 : i32, i32
  }
  func.func @transform_5(%arg0: i32) -> (i32, i32) {
    %c0_i32 = arith.constant 0 : i32
    %c0_i32_0 = arith.constant 0 : i32
    %c0_i32_1 = arith.constant 0 : i32
    return %c0_i32, %c0_i32_0 : i32, i32
  }
  func.func @transform_6(%arg0: i32) -> (i32, i32) {
    %c0_i32 = arith.constant 0 : i32
    %c0_i32_0 = arith.constant 0 : i32
    return %arg0, %c0_i32 : i32, i32
  }
}

</mosaic_0001>

<llo_original>
// kernel: tpu_custom_call.1
$region0: #{tpu_custom_call.1}
  #allocation0 [shape = 'u32[]', space=smem, size = 0x4, offset = 0x4, fixed_abs, tag = 'smem constant byte address 0x4 - core index']
  #allocation1 [shape = 'u32[72,128]{1,0:T(1,128)}', space=vmem, size = 0x9000, scoped, tag = 'internal scratch']
  %s0 = inlined_call_operand.hbm [shape: bf16[16,128], index: 0, kind: input, shape index: {}]
  %s1 = inlined_call_operand.hbm [shape: bf16[16,128], index: 1, kind: input, shape index: {}]
  %s2 = inlined_call_operand.hbm [shape: bf16[128,384], index: 2, kind: input, shape index: {}]
  %s3 = inlined_call_operand.hbm [shape: bf16[128,256], index: 3, kind: input, shape index: {}]
  %s4 = inlined_call_operand.hbm [shape: bf16[128,128], index: 4, kind: input, shape index: {}]
  %s5 = inlined_call_operand.vmem [shape: f32[1,128], index: 5, kind: input, shape index: {}]
  %s6 = inlined_call_operand.hbm [shape: f32[16,128], index: 6, kind: output, shape index: {}]
  %s7 = sld [smem:[#allocation0]]
  $region77: #{tpu_custom_call.1} parent=0
    _
  %s9 = ssub.s32 1, %s7
  %s10 = scalar_select 0, %s9, %s7
  $region1: #{tpu_custom_call.1} parent=0
    #allocation2 [shape = 'u8[4096]{0}', space=vmem, size = 0x1000, scoped, tag = 'input window, operand 0']
    #allocation3 [shape = 's32[2]{0}', space=sflag, size = 0x8, scoped, tag = 'scoped memory for tpu_custom_call.1']
    #allocation4 [shape = 's32[2]{0}', space=sflag, size = 0x8, scoped, tag = 'scoped memory for tpu_custom_call.1']
    #allocation5 [shape = 'u8[4096]{0}', space=vmem, size = 0x1000, scoped, tag = 'input window, operand 1']
    #allocation6 [shape = 's32[2]{0}', space=sflag, size = 0x8, scoped, tag = 'scoped memory for tpu_custom_call.1']
    #allocation7 [shape = 'u8[98304]{0}', space=vmem, size = 0x18000, scoped, tag = 'input window, operand 2, single buffered']
    #allocation8 [shape = 'u8[65536]{0}', space=vmem, size = 0x10000, scoped, tag = 'input window, operand 3, single buffered']
    #allocation9 [shape = 's32[1]{0}', space=sflag, size = 0x4, scoped, tag = 'scoped memory for tpu_custom_call.1']
    #allocation10 [shape = 'u8[32768]{0}', space=vmem, size = 0x8000, scoped, tag = 'input window, operand 4, single buffered']
    #allocation11 [shape = 'u8[8192]{0}', space=vmem, size = 0x2000, scoped, tag = 'output window, operand 0']
    %11 = vsyncpa [#allocation3], 0
    %s12 = scalar_lea.sflag [#allocation3], 1
    %13 = vsyncpa %s12, 0
    %14 = vsyncpa [#allocation6], 0
    %s15 = scalar_lea.sflag [#allocation6], 1
    %16 = vsyncpa %s15, 0
    %17 = vsyncpa [#allocation9], 0
    %18 = vsyncpa [#allocation4], 0
    %s19 = scalar_lea.sflag [#allocation4], 1
    %20 = vsyncpa %s19, 0
    loop: start=0, step=1, limit=4
    $region2: #{tpu_custom_call.1} parent=1 // loop_pre_header
      _
    $region3: #{tpu_custom_call.1} parent=1 // loop_header
      %s22 = sphi 0, %s26
      %p23 = scmp.ge.s32.totalorder %s22, 4
      %s32 = sphi 0, %s34
      %s35 = sphi 0, %s32
      %s36 = sphi 0, %s35
      %s52 = sphi 0, %s36
      %s58 = sphi 0, %s60
      %s61 = sphi 0, %s58
      %s62 = sphi 0, %s61
      %s78 = sphi 0, %s62
      %s82 = sphi 0, %s82
      %s84 = sphi 0, %s82
      %s85 = sphi 0, %s84
      %s99 = sphi 0, %s85
      %s103 = sphi 0, %s103
      %s105 = sphi 0, %s103
      %s106 = sphi 0, %s105
      %s120 = sphi 0, %s106
      %s124 = sphi 0, %s124
      %s126 = sphi 0, %s124
      %s127 = sphi 0, %s126
      %s141 = sphi 0, %s127
      %s145 = sphi 0, %s145
      %s147 = sphi 0, %s145
      %s148 = sphi 0, %s147
      %s162 = sphi 0, %s148
      %s168 = sphi 0, %s170
      %s171 = sphi 0, %s168
      %s172 = sphi 0, %s171
      %s188 = sphi 0, %s172
    $region4: #{tpu_custom_call.1} parent=1 // loop_header_branch
      %25 = sbr.rel (%p23) target = $region8
    $region5: #{tpu_custom_call.1} parent=1 // loop_body
      %s27 = ssub.s32 %s22, 1
      %s28 = ssub.s32 %s22, 2
      %s29 = sadd.s32 %s22, 1
      %s30 = ssub.s32 %s22, %s29
      %p31 = scmp.eq.s32.totalorder %s30, 0
      %s33 = sadd.s32 %s32, 1
      %s34 = scalar_select %p31, %s32, %s33
      %p37 = pneg %p31
      %p38 = scmp.eq.s32.totalorder %s22, 1
      %p39 = por %p37, %p38
      %p40 = scmp.ne.s32.totalorder %s32, %s35
      %p41 = scmp.eq.s32.totalorder %s22, 0
      %p42 = por %p40, %p41
      %p43 = scmp.ne.s32.totalorder %s32, %s35
      %p44 = scmp.eq.s32.totalorder %s27, 1
      %p45 = por %p43, %p44
      %p46 = scmp.ne.s32.totalorder %s35, %s36
      %p47 = scmp.eq.s32.totalorder %s27, 0
      %p48 = por %p46, %p47
      %p49 = scmp.ne.s32.totalorder %s35, %s36
      %p50 = scmp.eq.s32.totalorder %s28, 1
      %p51 = por %p49, %p50
      %p53 = scmp.ne.s32.totalorder %s36, %s52
      %p54 = scmp.eq.s32.totalorder %s28, 0
      %p55 = por %p53, %p54
      %s56 = ssub.s32 %s22, %s29
      %p57 = scmp.eq.s32.totalorder %s56, 0
      %s59 = sadd.s32 %s58, 1
      %s60 = scalar_select %p57, %s58, %s59
      %p63 = pneg %p57
      %p64 = scmp.eq.s32.totalorder %s22, 1
      %p65 = por %p63, %p64
      %p66 = scmp.ne.s32.totalorder %s58, %s61
      %p67 = scmp.eq.s32.totalorder %s22, 0
      %p68 = por %p66, %p67
      %p69 = scmp.ne.s32.totalorder %s58, %s61
      %p70 = scmp.eq.s32.totalorder %s27, 1
      %p71 = por %p69, %p70
      %p72 = scmp.ne.s32.totalorder %s61, %s62
      %p73 = scmp.eq.s32.totalorder %s27, 0
      %p74 = por %p72, %p73
      %p75 = scmp.ne.s32.totalorder %s61, %s62
      %p76 = scmp.eq.s32.totalorder %s28, 1
      %p77 = por %p75, %p76
      %p79 = scmp.ne.s32.totalorder %s62, %s78
      %p80 = scmp.eq.s32.totalorder %s28, 0
      %p81 = por %p79, %p80
      %s83 = sadd.s32 %s82, 1
      %p86 = scmp.eq.s32.totalorder %s22, 1
      %p87 = scmp.ne.s32.totalorder %s82, %s84
      %p88 = scmp.eq.s32.totalorder %s22, 0
      %p89 = por %p87, %p88
      %p90 = scmp.ne.s32.totalorder %s82, %s84
      %p91 = scmp.eq.s32.totalorder %s27, 1
      %p92 = por %p90, %p91
      %p93 = scmp.ne.s32.totalorder %s84, %s85
      %p94 = scmp.eq.s32.totalorder %s27, 0
      %p95 = por %p93, %p94
      %p96 = scmp.ne.s32.totalorder %s84, %s85
      %p97 = scmp.eq.s32.totalorder %s28, 1
      %p98 = por %p96, %p97
      %p100 = scmp.ne.s32.totalorder %s85, %s99
      %p101 = scmp.eq.s32.totalorder %s28, 0
      %p102 = por %p100, %p101
      %s104 = sadd.s32 %s103, 1
      %p107 = scmp.eq.s32.totalorder %s22, 1
      %p108 = scmp.ne.s32.totalorder %s103, %s105
      %p109 = scmp.eq.s32.totalorder %s22, 0
      %p110 = por %p108, %p109
      %p111 = scmp.ne.s32.totalorder %s103, %s105
      %p112 = scmp.eq.s32.totalorder %s27, 1
      %p113 = por %p111, %p112
      %p114 = scmp.ne.s32.totalorder %s105, %s106
      %p115 = scmp.eq.s32.totalorder %s27, 0
      %p116 = por %p114, %p115
      %p117 = scmp.ne.s32.totalorder %s105, %s106
      %p118 = scmp.eq.s32.totalorder %s28, 1
      %p119 = por %p117, %p118
      %p121 = scmp.ne.s32.totalorder %s106, %s120
      %p122 = scmp.eq.s32.totalorder %s28, 0
      %p123 = por %p121, %p122
      %s125 = sadd.s32 %s124, 1
      %p128 = scmp.eq.s32.totalorder %s22, 1
      %p129 = scmp.ne.s32.totalorder %s124, %s126
      %p130 = scmp.eq.s32.totalorder %s22, 0
      %p131 = por %p129, %p130
      %p132 = scmp.ne.s32.totalorder %s124, %s126
      %p133 = scmp.eq.s32.totalorder %s27, 1
      %p134 = por %p132, %p133
      %p135 = scmp.ne.s32.totalorder %s126, %s127
      %p136 = scmp.eq.s32.totalorder %s27, 0
      %p137 = por %p135, %p136
      %p138 = scmp.ne.s32.totalorder %s126, %s127
      %p139 = scmp.eq.s32.totalorder %s28, 1
      %p140 = por %p138, %p139
      %p142 = scmp.ne.s32.totalorder %s127, %s141
      %p143 = scmp.eq.s32.totalorder %s28, 0
      %p144 = por %p142, %p143
      %s146 = sadd.s32 %s145, 1
      %p149 = scmp.eq.s32.totalorder %s22, 1
      %p150 = scmp.ne.s32.totalorder %s145, %s147
      %p151 = scmp.eq.s32.totalorder %s22, 0
      %p152 = por %p150, %p151
      %p153 = scmp.ne.s32.totalorder %s145, %s147
      %p154 = scmp.eq.s32.totalorder %s27, 1
      %p155 = por %p153, %p154
      %p156 = scmp.ne.s32.totalorder %s147, %s148
      %p157 = scmp.eq.s32.totalorder %s27, 0
      %p158 = por %p156, %p157
      %p159 = scmp.ne.s32.totalorder %s147, %s148
      %p160 = scmp.eq.s32.totalorder %s28, 1
      %p161 = por %p159, %p160
      %p163 = scmp.ne.s32.totalorder %s148, %s162
      %p164 = scmp.eq.s32.totalorder %s28, 0
      %p165 = por %p163, %p164
      %s166 = ssub.s32 %s22, %s29
      %p167 = scmp.eq.s32.totalorder %s166, 0
      %s169 = sadd.s32 %s168, 1
      %s170 = scalar_select %p167, %s168, %s169
      %p173 = pneg %p167
      %p174 = scmp.eq.s32.totalorder %s22, 1
      %p175 = por %p173, %p174
      %p176 = scmp.ne.s32.totalorder %s168, %s171
      %p177 = scmp.eq.s32.totalorder %s22, 0
      %p178 = por %p176, %p177
      %p179 = scmp.ne.s32.totalorder %s168, %s171
      %p180 = scmp.eq.s32.totalorder %s27, 1
      %p181 = por %p179, %p180
      %p182 = scmp.ne.s32.totalorder %s171, %s172
      %p183 = scmp.eq.s32.totalorder %s27, 0
      %p184 = por %p182, %p183
      %p185 = scmp.ne.s32.totalorder %s171, %s172
      %p186 = scmp.eq.s32.totalorder %s28, 1
      %p187 = por %p185, %p186
      %p189 = scmp.ne.s32.totalorder %s172, %s188
      %p190 = scmp.eq.s32.totalorder %s28, 0
      %p191 = por %p189, %p190
      %p192 = scmp.le.s32.totalorder 1, %s22
      %p193 = scmp.lt.s32.totalorder %s22, 3
      %p194 = pnand %p192, %p193
      %p195 = pneg %p194
      // Predicated region
      $region9: #{tpu_custom_call.1} parent=5 // pred_check
        _
      $region10: #{tpu_custom_call.1} parent=5 // pred_check_branch
        %197 = sbr.rel (%p194) target = $region12
      $region11: #{tpu_custom_call.1} parent=5 // pred_region
        %s198 = ssub.s32 %s22, 1
        // Predicated region
        $region13: #{tpu_custom_call.1} parent=11 // pred_check
          %p199 = pneg %p95
        $region14: #{tpu_custom_call.1} parent=11 // pred_check_branch
          %201 = sbr.rel (%p199) target = $region16
        $region15: #{tpu_custom_call.1} parent=11 // pred_region
          %203 = vsyncadd [#allocation6], 0
          %s204 = sshll.u32 %s2, 4
          %s205 = int_to_ptr.hbm [resolvable:$true] %s204
          %s206 = sshll.u32 [#allocation7], 4
          %s207 = int_to_ptr.vmem [resolvable:$true] %s206
          %212 = dma.hbm_to_vmem [thread:$0]  %s205, 3072, %s207, [#allocation6], 192, 192, 12
        $region16: #{tpu_custom_call.1} parent=11 // pred_fallthru
          _
        // Predicated region
        $region17: #{tpu_custom_call.1} parent=11 // pred_check
          %p213 = pneg %p116
        $region18: #{tpu_custom_call.1} parent=11 // pred_check_branch
          %215 = sbr.rel (%p213) target = $region20
        $region19: #{tpu_custom_call.1} parent=11 // pred_region
          %217 = vsyncadd [#allocation9], 0
          %s218 = sshll.u32 %s3, 4
          %s219 = int_to_ptr.hbm [resolvable:$true] %s218
          %s220 = sshll.u32 [#allocation8], 4
          %s221 = int_to_ptr.vmem [resolvable:$true] %s220
          %226 = dma.hbm_to_vmem [thread:$0]  %s219, 2048, %s221, [#allocation9], 128, 128, 8
        $region20: #{tpu_custom_call.1} parent=11 // pred_fallthru
          _
        // Predicated region
        $region21: #{tpu_custom_call.1} parent=11 // pred_check
          %p227 = pneg %p137
        $region22: #{tpu_custom_call.1} parent=11 // pred_check_branch
          %229 = sbr.rel (%p227) target = $region24
        $region23: #{tpu_custom_call.1} parent=11 // pred_region
          %231 = vsyncadd [#allocation9], 0
          %s232 = sshll.u32 %s4, 4
          %s233 = int_to_ptr.hbm [resolvable:$true] %s232
          %s234 = sshll.u32 [#allocation10], 4
          %s235 = int_to_ptr.vmem [resolvable:$true] %s234
          %240 = dma.hbm_to_vmem [thread:$0]  %s233, 1024, %s235, [#allocation9], 64, 64, 4
        $region24: #{tpu_custom_call.1} parent=11 // pred_fallthru
          _
        // Predicated region
        $region25: #{tpu_custom_call.1} parent=11 // pred_check
          %p241 = pneg %p158
        $region26: #{tpu_custom_call.1} parent=11 // pred_check_branch
          %243 = sbr.rel (%p241) target = $region28
        $region27: #{tpu_custom_call.1} parent=11 // pred_region
          _
        $region28: #{tpu_custom_call.1} parent=11 // pred_fallthru
          _
      $region12: #{tpu_custom_call.1} parent=5 // pred_fallthru
        _
      %p244 = scmp.lt.s32.totalorder %s22, 2
      // Predicated region
      $region29: #{tpu_custom_call.1} parent=5 // pred_check
        %p245 = pneg %p244
      $region30: #{tpu_custom_call.1} parent=5 // pred_check_branch
        %247 = sbr.rel (%p245) target = $region32
      $region31: #{tpu_custom_call.1} parent=5 // pred_region
        // Predicated region
        $region33: #{tpu_custom_call.1} parent=31 // pred_check
          %p248 = pneg %p42
        $region34: #{tpu_custom_call.1} parent=31 // pred_check_branch
          %250 = sbr.rel (%p248) target = $region36
        $region35: #{tpu_custom_call.1} parent=31 // pred_region
          %s251 = sand.u32 %s32, 1
          %s252 = scalar_lea.sflag [#allocation3], %s251
          %s253 = sand.u32 %s32, 1
          %s254 = smul.addr %s253, 4
          %s255 = scalar_lea.vmem [#allocation2], %s254
          %257 = vsyncadd %s252, 0
          %s258 = smul.addr %s22, 4
          %s259 = scalar_lea.hbm %s0, %s258
          %s261 = sshll.u32 %s259, 4
          %s262 = int_to_ptr.hbm [resolvable:$true] %s261
          %s263 = sshll.u32 %s255, 4
          %s264 = int_to_ptr.vmem [resolvable:$true] %s263
          %266 = dma.hbm_to_vmem [thread:$0]  %s262, 64, %s264, %s252
        $region36: #{tpu_custom_call.1} parent=31 // pred_fallthru
          _
        // Predicated region
        $region37: #{tpu_custom_call.1} parent=31 // pred_check
          %p267 = pneg %p68
        $region38: #{tpu_custom_call.1} parent=31 // pred_check_branch
          %269 = sbr.rel (%p267) target = $region40
        $region39: #{tpu_custom_call.1} parent=31 // pred_region
          %s270 = sand.u32 %s22, 1
          %s271 = scalar_lea.sflag [#allocation6], %s270
          %s272 = sand.u32 %s58, 1
          %s273 = smul.addr %s272, 4
          %s274 = scalar_lea.vmem [#allocation5], %s273
          %276 = vsyncadd %s271, 0
          %s277 = smul.addr %s22, 4
          %s278 = scalar_lea.hbm %s1, %s277
          %s280 = sshll.u32 %s278, 4
          %s281 = int_to_ptr.hbm [resolvable:$true] %s280
          %s282 = sshll.u32 %s274, 4
          %s283 = int_to_ptr.vmem [resolvable:$true] %s282
          %285 = dma.hbm_to_vmem [thread:$0]  %s281, 64, %s283, %s271
        $region40: #{tpu_custom_call.1} parent=31 // pred_fallthru
          _
      $region32: #{tpu_custom_call.1} parent=5 // pred_fallthru
        _
      %p286 = scmp.le.s32.totalorder 1, %s22
      %p287 = scmp.lt.s32.totalorder %s22, 3
      %p288 = pnand %p286, %p287
      %p289 = pneg %p288
      // Predicated region
      $region41: #{tpu_custom_call.1} parent=5 // pred_check
        _
      $region42: #{tpu_custom_call.1} parent=5 // pred_check_branch
        %291 = sbr.rel (%p288) target = $region44
      $region43: #{tpu_custom_call.1} parent=5 // pred_region
        %s292 = ssub.s32 %s22, 1
        %s293 = sand.u32 %s35, 1
        %s294 = scalar_lea.sflag [#allocation3], %s293
        %s295 = sand.u32 %s35, 1
        %s296 = smul.addr %s295, 4
        %s297 = scalar_lea.vmem [#allocation2], %s296
        // Predicated region
        $region45: #{tpu_custom_call.1} parent=43 // pred_check
          %p298 = pneg %p48
        $region46: #{tpu_custom_call.1} parent=43 // pred_check_branch
          %300 = sbr.rel (%p298) target = $region48
        $region47: #{tpu_custom_call.1} parent=43 // pred_region
          %302 = dma.done %s294, 64
        $region48: #{tpu_custom_call.1} parent=43 // pred_fallthru
          _
        %s303 = sand.u32 %s27, 1
        %s304 = scalar_lea.sflag [#allocation6], %s303
        %s305 = sand.u32 %s61, 1
        %s306 = smul.addr %s305, 4
        %s307 = scalar_lea.vmem [#allocation5], %s306
        // Predicated region
        $region49: #{tpu_custom_call.1} parent=43 // pred_check
          %p308 = pneg %p74
        $region50: #{tpu_custom_call.1} parent=43 // pred_check_branch
          %310 = sbr.rel (%p308) target = $region52
        $region51: #{tpu_custom_call.1} parent=43 // pred_region
          %312 = dma.done %s304, 64
        $region52: #{tpu_custom_call.1} parent=43 // pred_fallthru
          _
        // Predicated region
        $region53: #{tpu_custom_call.1} parent=43 // pred_check
          %p313 = pneg %p95
        $region54: #{tpu_custom_call.1} parent=43 // pred_check_branch
          %315 = sbr.rel (%p313) target = $region56
        $region55: #{tpu_custom_call.1} parent=43 // pred_region
          %317 = dma.done [#allocation6], 3072
        $region56: #{tpu_custom_call.1} parent=43 // pred_fallthru
          _
        // Predicated region
        $region57: #{tpu_custom_call.1} parent=43 // pred_check
          %p318 = pneg %p116
        $region58: #{tpu_custom_call.1} parent=43 // pred_check_branch
          %320 = sbr.rel (%p318) target = $region60
        $region59: #{tpu_custom_call.1} parent=43 // pred_region
          %322 = dma.done [#allocation9], 2048
        $region60: #{tpu_custom_call.1} parent=43 // pred_fallthru
          _
        // Predicated region
        $region61: #{tpu_custom_call.1} parent=43 // pred_check
          %p323 = pneg %p137
        $region62: #{tpu_custom_call.1} parent=43 // pred_check_branch
          %325 = sbr.rel (%p323) target = $region64
        $region63: #{tpu_custom_call.1} parent=43 // pred_region
          %327 = dma.done [#allocation9], 1024
        $region64: #{tpu_custom_call.1} parent=43 // pred_fallthru
          _
        %s328 = sand.u32 %s35, 1
        %s329 = scalar_lea.sflag [#allocation3], %s328
        %s330 = sand.u32 %s35, 1
        %s331 = smul.addr %s330, 4
        %s332 = scalar_lea.vmem [#allocation2], %s331
        %p333 = pneg %p48
        %p334 = pneg %p45
        %s335 = sand.u32 %s27, 1
        %s336 = scalar_lea.sflag [#allocation6], %s335
        %s337 = sand.u32 %s61, 1
        %s338 = smul.addr %s337, 4
        %s339 = scalar_lea.vmem [#allocation5], %s338
        %p340 = pneg %p74
        %p341 = pneg %p71
        %p342 = pneg %p95
        %p343 = pneg %p92
        %p344 = pneg %p116
        %p345 = pneg %p113
        %p346 = pneg %p137
        %p347 = pneg %p134
        %p348 = pneg %p158
        %p349 = pneg %p155
        %p350 = pneg %p184
        %p351 = pneg %p181
        %s352 = sand.u32 %s171, 1
        %s353 = scalar_lea.sflag [#allocation4], %s352
        %s354 = sand.u32 %s171, 1
        %s355 = smul.addr %s354, 8
        %s356 = scalar_lea.vmem [#allocation11], %s355
        %v357 = vld [vmem:[%s297] sm:$0xf]
        %v358 = vld [vmem:[%s307] sm:$0xf]
        %v359 = vld [vmem:[#allocation7] sm:$0xff]
        %v360 = vld [vmem:[#allocation7 + $0x8] sm:$0xf]
        %v361 = vld [vmem:[#allocation7 + $0xc] sm:$0xff]
        %v362 = vld [vmem:[#allocation7 + $0x14] sm:$0xf]
        %v363 = vld [vmem:[#allocation7 + $0x18] sm:$0xff]
        %v364 = vld [vmem:[#allocation7 + $0x20] sm:$0xf]
        %v365 = vld [vmem:[#allocation7 + $0x24] sm:$0xff]
        %v366 = vld [vmem:[#allocation7 + $0x2c] sm:$0xf]
        %v367 = vld [vmem:[#allocation7 + $0x30] sm:$0xff]
        %v368 = vld [vmem:[#allocation7 + $0x38] sm:$0xf]
        %v369 = vld [vmem:[#allocation7 + $0x3c] sm:$0xff]
        %v370 = vld [vmem:[#allocation7 + $0x44] sm:$0xf]
        %v371 = vld [vmem:[#allocation7 + $0x48] sm:$0xff]
        %v372 = vld [vmem:[#allocation7 + $0x50] sm:$0xf]
        %v373 = vld [vmem:[#allocation7 + $0x54] sm:$0xff]
        %v374 = vld [vmem:[#allocation7 + $0x5c] sm:$0xf]
        %v375 = vld [vmem:[#allocation7 + $0x60] sm:$0xff]
        %v376 = vld [vmem:[#allocation7 + $0x68] sm:$0xf]
        %v377 = vld [vmem:[#allocation7 + $0x6c] sm:$0xff]
        %v378 = vld [vmem:[#allocation7 + $0x74] sm:$0xf]
        %v379 = vld [vmem:[#allocation7 + $0x78] sm:$0xff]
        %v380 = vld [vmem:[#allocation7 + $0x80] sm:$0xf]
        %v381 = vld [vmem:[#allocation7 + $0x84] sm:$0xff]
        %v382 = vld [vmem:[#allocation7 + $0x8c] sm:$0xf]
        %v383 = vld [vmem:[#allocation7 + $0x90] sm:$0xff]
        %v384 = vld [vmem:[#allocation7 + $0x98] sm:$0xf]
        %v385 = vld [vmem:[#allocation7 + $0x9c] sm:$0xff]
        %v386 = vld [vmem:[#allocation7 + $0xa4] sm:$0xf]
        %v387 = vld [vmem:[#allocation7 + $0xa8] sm:$0xff]
        %v388 = vld [vmem:[#allocation7 + $0xb0] sm:$0xf]
        %v389 = vld [vmem:[#allocation7 + $0xb4] sm:$0xff]
        %v390 = vld [vmem:[#allocation7 + $0xbc] sm:$0xf]
        %v423 = vunpack.c.l.b16 %v359
        %v424 = vunpack.c.h.b16 %v359
        %v425 = vunpack.c.l.b16 %v360
        %v426 = vunpack.c.l.b16 %v361
        %v427 = vunpack.c.h.b16 %v361
        %v428 = vunpack.c.l.b16 %v362
        %v429 = vunpack.c.l.b16 %v363
        %v430 = vunpack.c.h.b16 %v363
        %v431 = vunpack.c.l.b16 %v364
        %v432 = vunpack.c.l.b16 %v365
        %v433 = vunpack.c.h.b16 %v365
        %v434 = vunpack.c.l.b16 %v366
        %v435 = vunpack.c.l.b16 %v367
        %v436 = vunpack.c.h.b16 %v367
        %v437 = vunpack.c.l.b16 %v368
        %v438 = vunpack.c.l.b16 %v369
        %v439 = vunpack.c.h.b16 %v369
        %v440 = vunpack.c.l.b16 %v370
        %v441 = vunpack.c.l.b16 %v371
        %v442 = vunpack.c.h.b16 %v371
        %v443 = vunpack.c.l.b16 %v372
        %v444 = vunpack.c.l.b16 %v373
        %v445 = vunpack.c.h.b16 %v373
        %v446 = vunpack.c.l.b16 %v374
        %v447 = vunpack.c.l.b16 %v375
        %v448 = vunpack.c.h.b16 %v375
        %v449 = vunpack.c.l.b16 %v376
        %v450 = vunpack.c.l.b16 %v377
        %v451 = vunpack.c.h.b16 %v377
        %v452 = vunpack.c.l.b16 %v378
        %v453 = vunpack.c.l.b16 %v379
        %v454 = vunpack.c.h.b16 %v379
        %v455 = vunpack.c.l.b16 %v380
        %v456 = vunpack.c.l.b16 %v381
        %v457 = vunpack.c.h.b16 %v381
        %v458 = vunpack.c.l.b16 %v382
        %v459 = vunpack.c.l.b16 %v383
        %v460 = vunpack.c.h.b16 %v383
        %v461 = vunpack.c.l.b16 %v384
        %v462 = vunpack.c.l.b16 %v385
        %v463 = vunpack.c.h.b16 %v385
        %v464 = vunpack.c.l.b16 %v386
        %v465 = vunpack.c.l.b16 %v387
        %v466 = vunpack.c.h.b16 %v387
        %v467 = vunpack.c.l.b16 %v388
        %v468 = vunpack.c.l.b16 %v389
        %v469 = vunpack.c.h.b16 %v389
        %v470 = vunpack.c.l.b16 %v390
        %v471 = vpack.c.b16 %v426, %v423
        %v472 = vpack.c.b16 %v427, %v424
        %v473 = vpack.c.b16 %v428, %v425
        %v474 = vpack.c.b16 %v432, %v429
        %v475 = vpack.c.b16 %v433, %v430
        %v476 = vpack.c.b16 %v434, %v431
        %v477 = vpack.c.b16 %v438, %v435
        %v478 = vpack.c.b16 %v439, %v436
        %v479 = vpack.c.b16 %v440, %v437
        %v480 = vpack.c.b16 %v444, %v441
        %v481 = vpack.c.b16 %v445, %v442
        %v482 = vpack.c.b16 %v446, %v443
        %v483 = vpack.c.b16 %v450, %v447
        %v484 = vpack.c.b16 %v451, %v448
        %v485 = vpack.c.b16 %v452, %v449
        %v486 = vpack.c.b16 %v456, %v453
        %v487 = vpack.c.b16 %v457, %v454
        %v488 = vpack.c.b16 %v458, %v455
        %v489 = vpack.c.b16 %v462, %v459
        %v490 = vpack.c.b16 %v463, %v460
        %v491 = vpack.c.b16 %v464, %v461
        %v492 = vpack.c.b16 %v468, %v465
        %v493 = vpack.c.b16 %v469, %v466
        %v494 = vpack.c.b16 %v470, %v467
        %519 = vmatpush.bf16.msra.mxu0 %v492
        %520 = vmatpush.bf16.msra.mxu0 %v489
        %521 = vmatpush.bf16.msra.mxu0 %v486
        %522 = vmatpush.bf16.msra.mxu0 %v483
        %523 = vmatpush.bf16.msra.mxu0 %v480
        %524 = vmatpush.bf16.msra.mxu0 %v477
        %525 = vmatpush.bf16.msra.mxu0 %v474
        %526 = vmatpush.bf16.msra.mxu0 %v471
        %527 = vmatmul.bf16.gmra.mxu0 %v358
        %v528 = vpop.f32.mrf.mxu0
        %v529 = vadd.f32 0.0, %v528
        %v530 = vpop.f32.mrf.mxu0
        %531 = vdwg.mxu0
        %532 = vmatpush.bf16.msra.mxu0 %v493
        %533 = vmatpush.bf16.msra.mxu0 %v490
        %534 = vmatpush.bf16.msra.mxu0 %v487
        %535 = vmatpush.bf16.msra.mxu0 %v484
        %536 = vmatpush.bf16.msra.mxu0 %v481
        %537 = vmatpush.bf16.msra.mxu0 %v478
        %538 = vmatpush.bf16.msra.mxu0 %v475
        %539 = vmatpush.bf16.msra.mxu0 %v472
        %540 = vmatmul.bf16.gmra.mxu0 %v358
        %v541 = vpop.f32.mrf.mxu0
        %v542 = vadd.f32 0.0, %v541
        %v543 = vpop.f32.mrf.mxu0
        %544 = vdwg.mxu0
        %545 = vmatpush.bf16.msra.mxu0 %v494
        %546 = vmatpush.bf16.msra.mxu0 %v491
        %547 = vmatpush.bf16.msra.mxu0 %v488
        %548 = vmatpush.bf16.msra.mxu0 %v485
        %549 = vmatpush.bf16.msra.mxu0 %v482
        %550 = vmatpush.bf16.msra.mxu0 %v479
        %551 = vmatpush.bf16.msra.mxu0 %v476
        %552 = vmatpush.bf16.msra.mxu0 %v473
        %553 = vmatmul.bf16.gmra.mxu0 %v358
        %v554 = vpop.f32.mrf.mxu0
        %v555 = vadd.f32 0.0, %v554
        %v556 = vpop.f32.mrf.mxu0
        %557 = vdwg.mxu0
        %v558 = vld [vmem:[#allocation8] sm:$0xff]
        %v559 = vld [vmem:[#allocation8 + $0x8] sm:$0xff]
        %v560 = vld [vmem:[#allocation8 + $0x10] sm:$0xff]
        %v561 = vld [vmem:[#allocation8 + $0x18] sm:$0xff]
        %v562 = vld [vmem:[#allocation8 + $0x20] sm:$0xff]
        %v563 = vld [vmem:[#allocation8 + $0x28] sm:$0xff]
        %v564 = vld [vmem:[#allocation8 + $0x30] sm:$0xff]
        %v565 = vld [vmem:[#allocation8 + $0x38] sm:$0xff]
        %v566 = vld [vmem:[#allocation8 + $0x40] sm:$0xff]
        %v567 = vld [vmem:[#allocation8 + $0x48] sm:$0xff]
        %v568 = vld [vmem:[#allocation8 + $0x50] sm:$0xff]
        %v569 = vld [vmem:[#allocation8 + $0x58] sm:$0xff]
        %v570 = vld [vmem:[#allocation8 + $0x60] sm:$0xff]
        %v571 = vld [vmem:[#allocation8 + $0x68] sm:$0xff]
        %v572 = vld [vmem:[#allocation8 + $0x70] sm:$0xff]
        %v573 = vld [vmem:[#allocation8 + $0x78] sm:$0xff]
        %v590 = vunpack.c.l.b16 %v558
        %v591 = vunpack.c.h.b16 %v558
        %v592 = vunpack.c.l.b16 %v559
        %v593 = vunpack.c.h.b16 %v559
        %v594 = vunpack.c.l.b16 %v560
        %v595 = vunpack.c.h.b16 %v560
        %v596 = vunpack.c.l.b16 %v561
        %v597 = vunpack.c.h.b16 %v561
        %v598 = vunpack.c.l.b16 %v562
        %v599 = vunpack.c.h.b16 %v562
        %v600 = vunpack.c.l.b16 %v563
        %v601 = vunpack.c.h.b16 %v563
        %v602 = vunpack.c.l.b16 %v564
        %v603 = vunpack.c.h.b16 %v564
        %v604 = vunpack.c.l.b16 %v565
        %v605 = vunpack.c.h.b16 %v565
        %v606 = vunpack.c.l.b16 %v566
        %v607 = vunpack.c.h.b16 %v566
        %v608 = vunpack.c.l.b16 %v567
        %v609 = vunpack.c.h.b16 %v567
        %v610 = vunpack.c.l.b16 %v568
        %v611 = vunpack.c.h.b16 %v568
        %v612 = vunpack.c.l.b16 %v569
        %v613 = vunpack.c.h.b16 %v569
        %v614 = vunpack.c.l.b16 %v570
        %v615 = vunpack.c.h.b16 %v570
        %v616 = vunpack.c.l.b16 %v571
        %v617 = vunpack.c.h.b16 %v571
        %v618 = vunpack.c.l.b16 %v572
        %v619 = vunpack.c.h.b16 %v572
        %v620 = vunpack.c.l.b16 %v573
        %v621 = vunpack.c.h.b16 %v573
        %v622 = vpack.c.b16 %v592, %v590
        %v623 = vpack.c.b16 %v593, %v591
        %v624 = vpack.c.b16 %v596, %v594
        %v625 = vpack.c.b16 %v597, %v595
        %v626 = vpack.c.b16 %v600, %v598
        %v627 = vpack.c.b16 %v601, %v599
        %v628 = vpack.c.b16 %v604, %v602
        %v629 = vpack.c.b16 %v605, %v603
        %v630 = vpack.c.b16 %v608, %v606
        %v631 = vpack.c.b16 %v609, %v607
        %v632 = vpack.c.b16 %v612, %v610
        %v633 = vpack.c.b16 %v613, %v611
        %v634 = vpack.c.b16 %v616, %v614
        %v635 = vpack.c.b16 %v617, %v615
        %v636 = vpack.c.b16 %v620, %v618
        %v637 = vpack.c.b16 %v621, %v619
        %654 = vmatpush.bf16.msra.mxu0 %v636
        %655 = vmatpush.bf16.msra.mxu0 %v634
        %656 = vmatpush.bf16.msra.mxu0 %v632
        %657 = vmatpush.bf16.msra.mxu0 %v630
        %658 = vmatpush.bf16.msra.mxu0 %v628
        %659 = vmatpush.bf16.msra.mxu0 %v626
        %660 = vmatpush.bf16.msra.mxu0 %v624
        %661 = vmatpush.bf16.msra.mxu0 %v622
        %662 = vmatmul.bf16.gmra.mxu0 %v357
        %v663 = vpop.f32.mrf.mxu0
        %v664 = vadd.f32 0.0, %v663
        %v665 = vpop.f32.mrf.mxu0
        %666 = vdwg.mxu0
        %667 = vmatpush.bf16.msra.mxu0 %v637
        %668 = vmatpush.bf16.msra.mxu0 %v635
        %669 = vmatpush.bf16.msra.mxu0 %v633
        %670 = vmatpush.bf16.msra.mxu0 %v631
        %671 = vmatpush.bf16.msra.mxu0 %v629
        %672 = vmatpush.bf16.msra.mxu0 %v627
        %673 = vmatpush.bf16.msra.mxu0 %v625
        %674 = vmatpush.bf16.msra.mxu0 %v623
        %675 = vmatmul.bf16.gmra.mxu0 %v357
        %v676 = vpop.f32.mrf.mxu0
        %v677 = vadd.f32 0.0, %v676
        %v678 = vpop.f32.mrf.mxu0
        %679 = vdwg.mxu0
        %v680 = vunpack.c.l.bf16 %v357
        %v681 = vadd.f32 %v542, %v677
        %v682 = vxor.u32 %v681, 2147483648
        %v683 = vmul.f32 %v682, 1.442695
        %v684 = vpow.pop %v683
        %v685 = vadd.f32 %v684, 1.0
        %v686 = vrcp.pop %v685
        %v687 = vmul.f32 %v685, %v686
        %v688 = vsub.f32 1.0, %v687
        %v689 = vmul.f32 %v686, %v688
        %v690 = vadd.f32 %v686, %v689
        %vm691 = vweird.f32 %v685
        %vm692 = vweird.f32 %v686
        %vm693 = vmor %vm691, %vm692
        %v694 = vsel %vm693, %v686, %v690
        %v695 = vand.u32 2147483647, %v685
        %vm696 = vcmp.eq.f32.partialorder %v695, 8.507059e+37
        %v697 = vand.u32 %v685, 2147483648
        %v698 = vor.u32 1.1754944e-38, %v697
        %v699 = vsel %vm696, %v698, %v694
        %v700 = vmul.f32 1.0, %v699
        %v701 = vmul.f32 %v700, %v680
        %v702 = vpack.c.bf16 %v701, %v701
        %v703 = vld [vmem:[#allocation10] sm:$0xf]
        %v704 = vld [vmem:[#allocation10 + $0x4] sm:$0xf]
        %v705 = vld [vmem:[#allocation10 + $0x8] sm:$0xf]
        %v706 = vld [vmem:[#allocation10 + $0xc] sm:$0xf]
        %v707 = vld [vmem:[#allocation10 + $0x10] sm:$0xf]
        %v708 = vld [vmem:[#allocation10 + $0x14] sm:$0xf]
        %v709 = vld [vmem:[#allocation10 + $0x18] sm:$0xf]
        %v710 = vld [vmem:[#allocation10 + $0x1c] sm:$0xf]
        %v711 = vld [vmem:[#allocation10 + $0x20] sm:$0xf]
        %v712 = vld [vmem:[#allocation10 + $0x24] sm:$0xf]
        %v713 = vld [vmem:[#allocation10 + $0x28] sm:$0xf]
        %v714 = vld [vmem:[#allocation10 + $0x2c] sm:$0xf]
        %v715 = vld [vmem:[#allocation10 + $0x30] sm:$0xf]
        %v716 = vld [vmem:[#allocation10 + $0x34] sm:$0xf]
        %v717 = vld [vmem:[#allocation10 + $0x38] sm:$0xf]
        %v718 = vld [vmem:[#allocation10 + $0x3c] sm:$0xf]
        %v735 = vunpack.c.l.b16 %v703
        %v736 = vunpack.c.l.b16 %v704
        %v737 = vunpack.c.l.b16 %v705
        %v738 = vunpack.c.l.b16 %v706
        %v739 = vunpack.c.l.b16 %v707
        %v740 = vunpack.c.l.b16 %v708
        %v741 = vunpack.c.l.b16 %v709
        %v742 = vunpack.c.l.b16 %v710
        %v743 = vunpack.c.l.b16 %v711
        %v744 = vunpack.c.l.b16 %v712
        %v745 = vunpack.c.l.b16 %v713
        %v746 = vunpack.c.l.b16 %v714
        %v747 = vunpack.c.l.b16 %v715
        %v748 = vunpack.c.l.b16 %v716
        %v749 = vunpack.c.l.b16 %v717
        %v750 = vunpack.c.l.b16 %v718
        %v751 = vpack.c.b16 %v736, %v735
        %v752 = vpack.c.b16 %v738, %v737
        %v753 = vpack.c.b16 %v740, %v739
        %v754 = vpack.c.b16 %v742, %v741
        %v755 = vpack.c.b16 %v744, %v743
        %v756 = vpack.c.b16 %v746, %v745
        %v757 = vpack.c.b16 %v748, %v747
        %v758 = vpack.c.b16 %v750, %v749
        %767 = vmatpush.bf16.msra.mxu0 %v758
        %768 = vmatpush.bf16.msra.mxu0 %v757
        %769 = vmatpush.bf16.msra.mxu0 %v756
        %770 = vmatpush.bf16.msra.mxu0 %v755
        %771 = vmatpush.bf16.msra.mxu0 %v754
        %772 = vmatpush.bf16.msra.mxu0 %v753
        %773 = vmatpush.bf16.msra.mxu0 %v752
        %774 = vmatpush.bf16.msra.mxu0 %v751
        %775 = vmatmul.bf16.gmra.mxu0 %v702
        %v776 = vpop.f32.mrf.mxu0
        %v777 = vadd.f32 0.0, %v776
        %v778 = vpop.f32.mrf.mxu0
        %779 = vdwg.mxu0
        %v780 = vadd.f32 %v555, %v777
        %v781 = vtanh.pop %v780
        %v782 = vadd.f32 %v529, %v664
        %v783 = vld [vmem:[%s5] sm:$0x1]
        %v785 = vperm.slane %v783, 0
        %v787 = vadd.f32 %v782, %v785
        %v788 = vxor.u32 %v787, 2147483648
        %v789 = vmul.f32 %v788, 1.442695
        %v790 = vpow.pop %v789
        %v791 = vadd.f32 %v790, 1.0
        %v792 = vrcp.pop %v791
        %v793 = vmul.f32 %v791, %v792
        %v794 = vsub.f32 1.0, %v793
        %v795 = vmul.f32 %v792, %v794
        %v796 = vadd.f32 %v792, %v795
        %vm797 = vweird.f32 %v791
        %vm798 = vweird.f32 %v792
        %vm799 = vmor %vm797, %vm798
        %v800 = vsel %vm799, %v792, %v796
        %v801 = vand.u32 2147483647, %v791
        %vm802 = vcmp.eq.f32.partialorder %v801, 8.507059e+37
        %v803 = vand.u32 %v791, 2147483648
        %v804 = vor.u32 1.1754944e-38, %v803
        %v805 = vsel %vm802, %v804, %v800
        %v806 = vmul.f32 1.0, %v805
        %v807 = vsub.f32 %v781, %v680
        %v808 = vmul.f32 %v806, %v807
        %v809 = vadd.f32 %v680, %v808
        %810 = vst [vmem:[%s356] sm:$0xff] %v809
        %s811 = sand.u32 %s171, 1
        %s812 = scalar_lea.sflag [#allocation4], %s811
        %s813 = sand.u32 %s171, 1
        %s814 = smul.addr %s813, 8
        %s815 = scalar_lea.vmem [#allocation11], %s814
        // Predicated region
        $region65: #{tpu_custom_call.1} parent=43 // pred_check
          %p816 = pneg %p181
        $region66: #{tpu_custom_call.1} parent=43 // pred_check_branch
          %818 = sbr.rel (%p816) target = $region68
        $region67: #{tpu_custom_call.1} parent=43 // pred_region
          %820 = vsyncadd %s812, 0
          %s821 = smul.addr %s27, 8
          %s822 = scalar_lea.hbm %s6, %s821
          %s824 = sshll.u32 %s815, 4
          %s825 = int_to_ptr.vmem [resolvable:$true] %s824
          %s826 = sshll.u32 %s822, 4
          %s827 = int_to_ptr.hbm [resolvable:$true] %s826
          %829 = dma.vmem_to_hbm [thread:$0]  %s825, 128, %s827, %s812
        $region68: #{tpu_custom_call.1} parent=43 // pred_fallthru
          _
      $region44: #{tpu_custom_call.1} parent=5 // pred_fallthru
        _
      %p830 = scmp.le.s32.totalorder 2, %s22
      // Predicated region
      $region69: #{tpu_custom_call.1} parent=5 // pred_check
        %p831 = pneg %p830
      $region70: #{tpu_custom_call.1} parent=5 // pred_check_branch
        %833 = sbr.rel (%p831) target = $region72
      $region71: #{tpu_custom_call.1} parent=5 // pred_region
        %s834 = ssub.s32 %s22, 2
        // Predicated region
        $region73: #{tpu_custom_call.1} parent=71 // pred_check
          %p835 = pneg %p187
        $region74: #{tpu_custom_call.1} parent=71 // pred_check_branch
          %837 = sbr.rel (%p835) target = $region76
        $region75: #{tpu_custom_call.1} parent=71 // pred_region
          %s838 = sand.u32 %s172, 1
          %s839 = scalar_lea.sflag [#allocation4], %s838
          %s840 = sand.u32 %s172, 1
          %s841 = smul.addr %s840, 8
          %s842 = scalar_lea.vmem [#allocation11], %s841
          %844 = dma.done %s839, 128
        $region76: #{tpu_custom_call.1} parent=71 // pred_fallthru
          _
      $region72: #{tpu_custom_call.1} parent=5 // pred_fallthru
        _
    $region6: #{tpu_custom_call.1} parent=1 // loop_footer
      %s26 = sadd.s32 1, %s22
    $region7: #{tpu_custom_call.1} parent=1 // loop_footer_branch
      %21 = sbr.rel target = $region3
    $region8: #{tpu_custom_call.1} parent=1 // loop_exit
      _
    %845 = vsyncpa [#allocation3], 1
    %s846 = scalar_lea.sflag [#allocation3], 1
    %847 = vsyncpa %s846, 1
    %848 = vsyncpa [#allocation6], 1
    %s849 = scalar_lea.sflag [#allocation6], 1
    %850 = vsyncpa %s849, 1
    %851 = vsyncpa [#allocation9], 1
    %852 = vsyncpa [#allocation4], 1
    %s853 = scalar_lea.sflag [#allocation4], 1
    %854 = vsyncpa %s853, 1

</llo_original>
